<compile_context>
chip_gen: v7x
topology: tpu7x:2x2x1
jax: 0.10.0
libtpu: 0.0.40
codegen_flags: <defaults>
</compile_context>

<pallas_src>
import jax
import jax.numpy as jnp
from jax.experimental import pallas as pl
from jax.experimental.pallas import tpu as pltpu


_LANES = 128


def _round_up(x, m):
    return (x + m - 1) // m * m


def _keep_mask(shape, row0_u32, seed_u32, layer_idx):
    """Bernoulli(0.5) keep-mask from a stateless splitmix-style integer hash."""
    rows = jax.lax.broadcasted_iota(jnp.uint32, shape, 0) + row0_u32
    cols = jax.lax.broadcasted_iota(jnp.uint32, shape, 1)
    x = rows * jnp.uint32(shape[1]) + cols                      # unique counter per element
    x = x ^ seed_u32 ^ jnp.uint32((layer_idx * 0x9E3779B9) & 0xFFFFFFFF)
    x = x * jnp.uint32(0x9E3779B1)
    x = x ^ (x >> 15)
    x = x * jnp.uint32(0x85EBCA77)
    x = x ^ (x >> 13)
    x = x * jnp.uint32(0xC2B2AE3D)
    x = x ^ (x >> 16)
    return x < jnp.uint32(0x80000000)                           # top-bit test -> p(keep)=0.5


def _make_prenet_kernel(n_layers):
    """Fused kernel: x @ W1 -> ReLU -> dropout -> ... -> @ Wn -> ReLU -> dropout."""

    def kernel(seed_ref, x_ref, *rest):
        w_refs = rest[:n_layers]
        o_ref = rest[n_layers]

        tile_m = x_ref.shape[0]
        row0 = jax.lax.convert_element_type(pl.program_id(0) * tile_m, jnp.uint32)
        seed = jax.lax.convert_element_type(seed_ref[0], jnp.uint32)

        h = x_ref[...]                                          # bf16 (TILE_M, K_pad)
        for li, w_ref in enumerate(w_refs):
            # Linear (no bias): bf16 operands, f32 accumulation on the MXU.
            y = jnp.dot(h.astype(jnp.bfloat16), w_ref[...],
                        preferred_element_type=jnp.float32)
            # ReLU in f32 on the VPU.
            y = jnp.maximum(y, jnp.float32(0.0))
            # Inverted dropout, p = 0.5, always on: keep -> *2 (folded as y+y), drop -> 0.
            keep = _keep_mask(y.shape, row0, seed, li)
            y = jnp.where(keep, y + y, jnp.zeros_like(y))
            h = y
        o_ref[...] = h.astype(o_ref.dtype)

    return kernel


def prepare_prenet_weights(weights):
    """One-time prep: transpose PyTorch (out, in) -> (in, out), zero-pad both dims
    to 128 lanes, cast to bf16. Returns (padded_weights, final_out_dim)."""
    prepped = []
    for w in weights:
        out_size, in_size = w.shape
        k_pad = _round_up(in_size, _LANES)
        n_pad = _round_up(out_size, _LANES)
        w_t = jnp.transpose(w).astype(jnp.bfloat16)             # (in, out)
        w_p = jnp.zeros((k_pad, n_pad), jnp.bfloat16).at[:in_size, :out_size].set(w_t)
        prepped.append(w_p)
    return tuple(prepped), int(weights[-1].shape[0])


def prenet_forward(x, padded_weights, out_dim, seed=0, tile_m_max=512):
    """Prenet forward. x: (..., in_dim) f32 -> (..., out_dim) f32."""
    lead_shape = x.shape[:-1]
    in_dim = x.shape[-1]
    h = x.reshape(-1, in_dim)
    m = h.shape[0]

    k_pad = padded_weights[0].shape[0]
    n_out_pad = padded_weights[-1].shape[1]
    n_layers = len(padded_weights)

    # Row tile: big (up to 512) for real workloads, rounded to a sublane multiple
    # for tiny ones. Pad M so the grid divides evenly; padded rows are zeros and
    # get sliced away below.
    tile_m = tile_m_max if m >= tile_m_max else _round_up(max(m, 1), 8)
    m_pad = _round_up(m, tile_m)

    x_p = jnp.zeros((m_pad, k_pad), jnp.bfloat16).at[:m, :in_dim].set(
        h.astype(jnp.bfloat16))
    seed_arr = jnp.asarray([seed], dtype=jnp.int32)

    in_specs = [pl.BlockSpec((tile_m, k_pad), lambda i, seed_ref: (i, 0))]
    for w in padded_weights:
        in_specs.append(pl.BlockSpec(w.shape, lambda i, seed_ref: (0, 0)))
    out_spec = pl.BlockSpec((tile_m, n_out_pad), lambda i, seed_ref: (i, 0))

    out_padded = pl.pallas_call(
        _make_prenet_kernel(n_layers),
        out_shape=jax.ShapeDtypeStruct((m_pad, n_out_pad), jnp.float32),
        grid_spec=pltpu.PrefetchScalarGridSpec(
            num_scalar_prefetch=1,
            grid=(m_pad // tile_m,),
            in_specs=in_specs,
            out_specs=out_spec,
        ),
        compiler_params=pltpu.CompilerParams(
            dimension_semantics=("parallel",),
        ),
    )(seed_arr, x_p, *padded_weights)

    out = out_padded[:m, :out_dim]
    return out.reshape(*lead_shape, out_dim)


def _init_prenet_weights(key, in_dim, sizes):
    """Deterministic xavier-uniform init matching LinearNorm(bias=False) shapes."""
    in_sizes = [in_dim] + sizes[:-1]
    weights = []
    for in_size, out_size in zip(in_sizes, sizes):
        key, sub = jax.random.split(key)
        limit = (6.0 / (in_size + out_size)) ** 0.5
        w = jax.random.uniform(
            sub, (out_size, in_size), dtype=jnp.float32, minval=-limit, maxval=limit
        )
        weights.append(w)
    return weights


if __name__ == "__main__":
    key = jax.random.PRNGKey(0)
    k_x, k_w = jax.random.split(key)

    # Small shapes consistent with Prenet: (batch, time, in_dim) decoder input.
    batch, time, in_dim = 2, 8, 32
    sizes = [64, 32]

    x = jax.random.normal(k_x, (batch, time, in_dim), dtype=jnp.float32)
    weights = _init_prenet_weights(k_w, in_dim, sizes)

    padded_weights, out_dim = prepare_prenet_weights(weights)   # one-time prep
    out = prenet_forward(x, padded_weights, out_dim, seed=1234)
    out = jax.block_until_ready(out)

    assert out.shape == (batch, time, sizes[-1]), out.shape
    assert out.dtype == jnp.float32
    assert bool(jnp.all(jnp.isfinite(out)))
    print("KERNEL_OK")
</pallas_src>

<mosaic_0001>
module attributes {stable_mosaic.version = 11 : i64} {
  func.func @kernel(%arg0: i32, %arg1: memref<1xi32, #tpu.memory_space<smem>>, %arg2: memref<16x128xbf16, #tpu.memory_space<vmem>>, %arg3: memref<128x128xbf16, #tpu.memory_space<vmem>>, %arg4: memref<128x128xbf16, #tpu.memory_space<vmem>>, %arg5: memref<16x128xf32, #tpu.memory_space<vmem>>) attributes {dimension_semantics = [#tpu.dimension_semantics<parallel>], iteration_bounds = array<i64: 1>, scalar_prefetch = 1 : i64, scratch_operands = 0 : i64, tpu.core_type = #tpu.core_type<tc>, window_params = [{transform_indices = @transform_0, window_bounds = array<i64: 16, 128>}, {pipeline_mode = #tpu.pipeline_mode<synchronous>, transform_indices = @transform_1, window_bounds = array<i64: 128, 128>}, {pipeline_mode = #tpu.pipeline_mode<synchronous>, transform_indices = @transform_2, window_bounds = array<i64: 128, 128>}, {transform_indices = @transform_3, window_bounds = array<i64: 16, 128>}]} {
    %c16_i32 = arith.constant 16 : i32
    %0 = arith.muli %arg0, %c16_i32 : i32
    %c0 = arith.constant 0 : index
    %1 = memref.load %arg1[%c0] : memref<1xi32, #tpu.memory_space<smem>>
    %c0_0 = arith.constant 0 : index
    %c0_1 = arith.constant 0 : index
    %2 = vector.load %arg2[%c0_0, %c0_1] : memref<16x128xbf16, #tpu.memory_space<vmem>>, vector<16x128xbf16>
    %c0_2 = arith.constant 0 : index
    %c0_3 = arith.constant 0 : index
    %3 = vector.load %arg3[%c0_2, %c0_3] : memref<128x128xbf16, #tpu.memory_space<vmem>>, vector<128x128xbf16>
    %cst = arith.constant dense<0.000000e+00> : vector<16x128xf32>
    %4 = tpu.matmul %2, %3, %cst {dimension_numbers = #tpu.dot_dimension_numbers<[1], [0], [0], [1], [0, 0, 1, 1], [], []>} : vector<16x128xbf16>, vector<128x128xbf16>, vector<16x128xf32> -> vector<16x128xf32>
    %cst_4 = arith.constant 0.000000e+00 : f32
    %5 = vector.broadcast %cst_4 : f32 to vector<16x128xf32>
    %6 = arith.maximumf %4, %5 : vector<16x128xf32>
    %7 = tpu.iota {dimensions = array<i32: 0>} : vector<16x128xi32>
    %8 = vector.broadcast %0 : i32 to vector<16x128xi32>
    %9 = arith.addi %7, %8 : vector<16x128xi32>
    %10 = tpu.iota {dimensions = array<i32: 1>} : vector<16x128xi32>
    %c128_i32 = arith.constant 128 : i32
    %11 = vector.broadcast %c128_i32 : i32 to vector<16x128xi32>
    %12 = arith.muli %9, %11 : vector<16x128xi32>
    %13 = arith.addi %12, %10 : vector<16x128xi32>
    %14 = vector.broadcast %1 : i32 to vector<16x128xi32>
    %15 = arith.xori %13, %14 : vector<16x128xi32>
    %c0_i32 = arith.constant 0 : i32
    %16 = vector.broadcast %c0_i32 : i32 to vector<16x128xi32>
    %17 = arith.xori %15, %16 : vector<16x128xi32>
    %c-1640531535_i32 = arith.constant -1640531535 : i32
    %18 = vector.broadcast %c-1640531535_i32 : i32 to vector<16x128xi32>
    %19 = arith.muli %17, %18 : vector<16x128xi32>
    %c15_i32 = arith.constant 15 : i32
    %20 = vector.broadcast %c15_i32 : i32 to vector<16x128xi32>
    %21 = arith.shrui %19, %20 : vector<16x128xi32>
    %22 = arith.xori %19, %21 : vector<16x128xi32>
    %c-2048144777_i32 = arith.constant -2048144777 : i32
    %23 = vector.broadcast %c-2048144777_i32 : i32 to vector<16x128xi32>
    %24 = arith.muli %22, %23 : vector<16x128xi32>
    %c13_i32 = arith.constant 13 : i32
    %25 = vector.broadcast %c13_i32 : i32 to vector<16x128xi32>
    %26 = arith.shrui %24, %25 : vector<16x128xi32>
    %27 = arith.xori %24, %26 : vector<16x128xi32>
    %c-1028477379_i32 = arith.constant -1028477379 : i32
    %28 = vector.broadcast %c-1028477379_i32 : i32 to vector<16x128xi32>
    %29 = arith.muli %27, %28 : vector<16x128xi32>
    %c16_i32_5 = arith.constant 16 : i32
    %30 = vector.broadcast %c16_i32_5 : i32 to vector<16x128xi32>
    %31 = arith.shrui %29, %30 : vector<16x128xi32>
    %32 = arith.xori %29, %31 : vector<16x128xi32>
    %c-2147483648_i32 = arith.constant -2147483648 : i32
    %33 = vector.broadcast %c-2147483648_i32 : i32 to vector<16x128xi32>
    %34 = arith.cmpi ult, %32, %33 : vector<16x128xi32>
    %35 = arith.addf %6, %6 : vector<16x128xf32>
    %cst_6 = arith.constant 0.000000e+00 : f32
    %36 = vector.broadcast %cst_6 : f32 to vector<16x128xf32>
    %37 = arith.select %34, %35, %36 : vector<16x128xi1>, vector<16x128xf32>
    %38 = arith.truncf %37 : vector<16x128xf32> to vector<16x128xbf16>
    %c0_7 = arith.constant 0 : index
    %c0_8 = arith.constant 0 : index
    %39 = vector.load %arg4[%c0_7, %c0_8] : memref<128x128xbf16, #tpu.memory_space<vmem>>, vector<128x128xbf16>
    %cst_9 = arith.constant dense<0.000000e+00> : vector<16x128xf32>
    %40 = tpu.matmul %38, %39, %cst_9 {dimension_numbers = #tpu.dot_dimension_numbers<[1], [0], [0], [1], [0, 0, 1, 1], [], []>} : vector<16x128xbf16>, vector<128x128xbf16>, vector<16x128xf32> -> vector<16x128xf32>
    %cst_10 = arith.constant 0.000000e+00 : f32
    %41 = vector.broadcast %cst_10 : f32 to vector<16x128xf32>
    %42 = arith.maximumf %40, %41 : vector<16x128xf32>
    %43 = tpu.iota {dimensions = array<i32: 0>} : vector<16x128xi32>
    %44 = vector.broadcast %0 : i32 to vector<16x128xi32>
    %45 = arith.addi %43, %44 : vector<16x128xi32>
    %46 = tpu.iota {dimensions = array<i32: 1>} : vector<16x128xi32>
    %c128_i32_11 = arith.constant 128 : i32
    %47 = vector.broadcast %c128_i32_11 : i32 to vector<16x128xi32>
    %48 = arith.muli %45, %47 : vector<16x128xi32>
    %49 = arith.addi %48, %46 : vector<16x128xi32>
    %50 = vector.broadcast %1 : i32 to vector<16x128xi32>
    %51 = arith.xori %49, %50 : vector<16x128xi32>
    %c-1640531527_i32 = arith.constant -1640531527 : i32
    %52 = vector.broadcast %c-1640531527_i32 : i32 to vector<16x128xi32>
    %53 = arith.xori %51, %52 : vector<16x128xi32>
    %c-1640531535_i32_12 = arith.constant -1640531535 : i32
    %54 = vector.broadcast %c-1640531535_i32_12 : i32 to vector<16x128xi32>
    %55 = arith.muli %53, %54 : vector<16x128xi32>
    %c15_i32_13 = arith.constant 15 : i32
    %56 = vector.broadcast %c15_i32_13 : i32 to vector<16x128xi32>
    %57 = arith.shrui %55, %56 : vector<16x128xi32>
    %58 = arith.xori %55, %57 : vector<16x128xi32>
    %c-2048144777_i32_14 = arith.constant -2048144777 : i32
    %59 = vector.broadcast %c-2048144777_i32_14 : i32 to vector<16x128xi32>
    %60 = arith.muli %58, %59 : vector<16x128xi32>
    %c13_i32_15 = arith.constant 13 : i32
    %61 = vector.broadcast %c13_i32_15 : i32 to vector<16x128xi32>
    %62 = arith.shrui %60, %61 : vector<16x128xi32>
    %63 = arith.xori %60, %62 : vector<16x128xi32>
    %c-1028477379_i32_16 = arith.constant -1028477379 : i32
    %64 = vector.broadcast %c-1028477379_i32_16 : i32 to vector<16x128xi32>
    %65 = arith.muli %63, %64 : vector<16x128xi32>
    %c16_i32_17 = arith.constant 16 : i32
    %66 = vector.broadcast %c16_i32_17 : i32 to vector<16x128xi32>
    %67 = arith.shrui %65, %66 : vector<16x128xi32>
    %68 = arith.xori %65, %67 : vector<16x128xi32>
    %c-2147483648_i32_18 = arith.constant -2147483648 : i32
    %69 = vector.broadcast %c-2147483648_i32_18 : i32 to vector<16x128xi32>
    %70 = arith.cmpi ult, %68, %69 : vector<16x128xi32>
    %71 = arith.addf %42, %42 : vector<16x128xf32>
    %cst_19 = arith.constant 0.000000e+00 : f32
    %72 = vector.broadcast %cst_19 : f32 to vector<16x128xf32>
    %73 = arith.select %70, %71, %72 : vector<16x128xi1>, vector<16x128xf32>
    %c0_20 = arith.constant 0 : index
    %c0_21 = arith.constant 0 : index
    %74 = vector.load %arg5[%c0_20, %c0_21] : memref<16x128xf32, #tpu.memory_space<vmem>>, vector<16x128xf32>
    tpu.vector_store %arg5[%c0_20, %c0_21], %73 {strides = array<i32>} : memref<16x128xf32, #tpu.memory_space<vmem>>, vector<16x128xf32>,
    return
  }
  func.func @transform_0(%arg0: i32, %arg1: memref<1xi32, #tpu.memory_space<smem>>) -> (i32, i32) {
    %c0_i32 = arith.constant 0 : i32
    %c0_i32_0 = arith.constant 0 : i32
    return %arg0, %c0_i32 : i32, i32
  }
  func.func @transform_1(%arg0: i32, %arg1: memref<1xi32, #tpu.memory_space<smem>>) -> (i32, i32) {
    %c0_i32 = arith.constant 0 : i32
    %c0_i32_0 = arith.constant 0 : i32
    %c0_i32_1 = arith.constant 0 : i32
    return %c0_i32, %c0_i32_0 : i32, i32
  }
  func.func @transform_2(%arg0: i32, %arg1: memref<1xi32, #tpu.memory_space<smem>>) -> (i32, i32) {
    %c0_i32 = arith.constant 0 : i32
    %c0_i32_0 = arith.constant 0 : i32
    %c0_i32_1 = arith.constant 0 : i32
    return %c0_i32, %c0_i32_0 : i32, i32
  }
  func.func @transform_3(%arg0: i32, %arg1: memref<1xi32, #tpu.memory_space<smem>>) -> (i32, i32) {
    %c0_i32 = arith.constant 0 : i32
    %c0_i32_0 = arith.constant 0 : i32
    return %arg0, %c0_i32 : i32, i32
  }
}

</mosaic_0001>

<llo_original>
// kernel: tpu_custom_call.1
$region0: #{tpu_custom_call.1}
  #allocation0 [shape = 'u32[]', space=smem, size = 0x4, offset = 0x4, fixed_abs, tag = 'smem constant byte address 0x4 - core index']
  #allocation1 [shape = 'u32[144,128]{1,0:T(1,128)}', space=vmem, size = 0x12000, scoped, tag = 'internal scratch']
  #allocation2 [shape = 's32[1]{0}', space=sflag, size = 0x4, scoped, tag = 'scoped memory for tpu_custom_call.1']
  #allocation3 [shape = 's32[1]{0:T(128)S(6)}', space=smem, size = 0x200, scoped, tag = 'prefetched SMEM operand 0']
  %s0 = inlined_call_operand.<no memory space> [shape: s32[1], index: 0, kind: input, shape index: {}]
  %s1 = inlined_call_operand.hbm [shape: bf16[16,128], index: 1, kind: input, shape index: {}]
  %s2 = inlined_call_operand.hbm [shape: bf16[128,128], index: 2, kind: input, shape index: {}]
  %s3 = inlined_call_operand.hbm [shape: bf16[128,128], index: 3, kind: input, shape index: {}]
  %s4 = inlined_call_operand.hbm [shape: f32[16,128], index: 4, kind: output, shape index: {}]
  %s5 = sld [smem:[#allocation0]]
  $region34: #{tpu_custom_call.1} parent=0
    _
  %s7 = ssub.s32 1, %s5
  %s8 = scalar_select 0, %s7, %s5
  %9 = sst [smem:[#allocation3]] %s0
  $region1: #{tpu_custom_call.1} parent=0
    #allocation4 [shape = 'u8[4096]{0}', space=vmem, size = 0x1000, scoped, tag = 'input window, operand 1, single buffered']
    #allocation5 [shape = 's32[1]{0}', space=sflag, size = 0x4, scoped, tag = 'scoped memory for tpu_custom_call.1']
    #allocation6 [shape = 's32[1]{0}', space=sflag, size = 0x4, scoped, tag = 'scoped memory for tpu_custom_call.1']
    #allocation7 [shape = 'u8[32768]{0}', space=vmem, size = 0x8000, scoped, tag = 'input window, operand 2, single buffered']
    #allocation8 [shape = 's32[1]{0}', space=sflag, size = 0x4, scoped, tag = 'scoped memory for tpu_custom_call.1']
    #allocation9 [shape = 'u8[32768]{0}', space=vmem, size = 0x8000, scoped, tag = 'input window, operand 3, single buffered']
    #allocation10 [shape = 'u8[8192]{0}', space=vmem, size = 0x2000, scoped, tag = 'output window, operand 0, single buffered']
    %10 = vsyncpa [#allocation5], 0
    %11 = vsyncpa [#allocation8], 0
    %12 = vsyncpa [#allocation6], 0
    // Predicated region
    $region2: #{tpu_custom_call.1} parent=1 // pred_check
      _
    $region3: #{tpu_custom_call.1} parent=1 // pred_check_branch
      %14 = sbr.rel (0) target = $region5
    $region4: #{tpu_custom_call.1} parent=1 // pred_region
      %s16 = ssub.s32 128, 128
      %17 = vsyncadd [#allocation5], %s16
      %s18 = sshll.u32 [#allocation4], 4
      %s19 = int_to_ptr.vmem [resolvable:$true] %s18
      %24 = dma.hbm_to_vmem [thread:$0]  %s1, 128, %s19, [#allocation5], 64, 64, 4
    $region5: #{tpu_custom_call.1} parent=1 // pred_fallthru
      _
    // Predicated region
    $region6: #{tpu_custom_call.1} parent=1 // pred_check
      _
    $region7: #{tpu_custom_call.1} parent=1 // pred_check_branch
      %26 = sbr.rel (0) target = $region9
    $region8: #{tpu_custom_call.1} parent=1 // pred_region
      %s28 = ssub.s32 1024, 1024
      %29 = vsyncadd [#allocation8], %s28
      %s30 = sshll.u32 [#allocation7], 4
      %s31 = int_to_ptr.vmem [resolvable:$true] %s30
      %36 = dma.hbm_to_vmem [thread:$0]  %s2, 1024, %s31, [#allocation8], 64, 64, 4
    $region9: #{tpu_custom_call.1} parent=1 // pred_fallthru
      _
    // Predicated region
    $region10: #{tpu_custom_call.1} parent=1 // pred_check
      _
    $region11: #{tpu_custom_call.1} parent=1 // pred_check_branch
      %38 = sbr.rel (0) target = $region13
    $region12: #{tpu_custom_call.1} parent=1 // pred_region
      %s40 = ssub.s32 1024, 1024
      %41 = vsyncadd [#allocation8], %s40
      %s42 = sshll.u32 [#allocation9], 4
      %s43 = int_to_ptr.vmem [resolvable:$true] %s42
      %48 = dma.hbm_to_vmem [thread:$0]  %s3, 1024, %s43, [#allocation8], 64, 64, 4
    $region13: #{tpu_custom_call.1} parent=1 // pred_fallthru
      _
    // Predicated region
    $region14: #{tpu_custom_call.1} parent=1 // pred_check
      _
    $region15: #{tpu_custom_call.1} parent=1 // pred_check_branch
      %50 = sbr.rel (0) target = $region17
    $region16: #{tpu_custom_call.1} parent=1 // pred_region
      %51 = dma.done [#allocation5], 128
    $region17: #{tpu_custom_call.1} parent=1 // pred_fallthru
      _
    // Predicated region
    $region18: #{tpu_custom_call.1} parent=1 // pred_check
      _
    $region19: #{tpu_custom_call.1} parent=1 // pred_check_branch
      %53 = sbr.rel (0) target = $region21
    $region20: #{tpu_custom_call.1} parent=1 // pred_region
      %54 = dma.done [#allocation8], 1024
    $region21: #{tpu_custom_call.1} parent=1 // pred_fallthru
      _
    // Predicated region
    $region22: #{tpu_custom_call.1} parent=1 // pred_check
      _
    $region23: #{tpu_custom_call.1} parent=1 // pred_check_branch
      %56 = sbr.rel (0) target = $region25
    $region24: #{tpu_custom_call.1} parent=1 // pred_region
      %57 = dma.done [#allocation8], 1024
    $region25: #{tpu_custom_call.1} parent=1 // pred_fallthru
      _
    %s59 = smul.u32 0, 16
    %s60 = sld [smem:[#allocation3]]
    %v61 = vld [vmem:[#allocation4] sm:$0xf]
    %v62 = vld [vmem:[#allocation4 + $0x4] sm:$0xf]
    %v63 = vld [vmem:[#allocation7] sm:$0xf]
    %v64 = vld [vmem:[#allocation7 + $0x4] sm:$0xf]
    %v65 = vld [vmem:[#allocation7 + $0x8] sm:$0xf]
    %v66 = vld [vmem:[#allocation7 + $0xc] sm:$0xf]
    %v67 = vld [vmem:[#allocation7 + $0x10] sm:$0xf]
    %v68 = vld [vmem:[#allocation7 + $0x14] sm:$0xf]
    %v69 = vld [vmem:[#allocation7 + $0x18] sm:$0xf]
    %v70 = vld [vmem:[#allocation7 + $0x1c] sm:$0xf]
    %v71 = vld [vmem:[#allocation7 + $0x20] sm:$0xf]
    %v72 = vld [vmem:[#allocation7 + $0x24] sm:$0xf]
    %v73 = vld [vmem:[#allocation7 + $0x28] sm:$0xf]
    %v74 = vld [vmem:[#allocation7 + $0x2c] sm:$0xf]
    %v75 = vld [vmem:[#allocation7 + $0x30] sm:$0xf]
    %v76 = vld [vmem:[#allocation7 + $0x34] sm:$0xf]
    %v77 = vld [vmem:[#allocation7 + $0x38] sm:$0xf]
    %v78 = vld [vmem:[#allocation7 + $0x3c] sm:$0xf]
    %v81 = vunpack.c.l.b16 %v61
    %v82 = vunpack.c.l.b16 %v62
    %v83 = vpack.c.b16 %v82, %v81
    %v101 = vunpack.c.l.b16 %v63
    %v102 = vunpack.c.l.b16 %v64
    %v103 = vunpack.c.l.b16 %v65
    %v104 = vunpack.c.l.b16 %v66
    %v105 = vunpack.c.l.b16 %v67
    %v106 = vunpack.c.l.b16 %v68
    %v107 = vunpack.c.l.b16 %v69
    %v108 = vunpack.c.l.b16 %v70
    %v109 = vunpack.c.l.b16 %v71
    %v110 = vunpack.c.l.b16 %v72
    %v111 = vunpack.c.l.b16 %v73
    %v112 = vunpack.c.l.b16 %v74
    %v113 = vunpack.c.l.b16 %v75
    %v114 = vunpack.c.l.b16 %v76
    %v115 = vunpack.c.l.b16 %v77
    %v116 = vunpack.c.l.b16 %v78
    %v117 = vpack.c.b16 %v102, %v101
    %v118 = vpack.c.b16 %v104, %v103
    %v119 = vpack.c.b16 %v106, %v105
    %v120 = vpack.c.b16 %v108, %v107
    %v121 = vpack.c.b16 %v110, %v109
    %v122 = vpack.c.b16 %v112, %v111
    %v123 = vpack.c.b16 %v114, %v113
    %v124 = vpack.c.b16 %v116, %v115
    %133 = vmatprep.subr.bf16.mxu0 0
    %134 = vmatpush1.bf16.msra.mxu0 %v117
    %135 = vmatprep.subr.bf16.mxu0 0
    %136 = vmatpush1.bf16.msra.mxu0 %v118
    %137 = vmatprep.subr.bf16.mxu0 0
    %138 = vmatpush1.bf16.msra.mxu0 %v119
    %139 = vmatprep.subr.bf16.mxu0 0
    %140 = vmatpush1.bf16.msra.mxu0 %v120
    %141 = vmatprep.subr.bf16.mxu0 0
    %142 = vmatpush1.bf16.msra.mxu0 %v121
    %143 = vmatprep.subr.bf16.mxu0 0
    %144 = vmatpush1.bf16.msra.mxu0 %v122
    %145 = vmatprep.subr.bf16.mxu0 0
    %146 = vmatpush1.bf16.msra.mxu0 %v123
    %147 = vmatprep.subr.bf16.mxu0 0
    %148 = vmatpush1.bf16.msra.mxu0 %v124
    %149 = vmatprep.subr.bf16.mxu0 0
    %150 = vmatpush1.bf16.msra.mxu0 0
    %151 = vmatprep.subr.bf16.mxu0 0
    %152 = vmatpush1.bf16.msra.mxu0 0
    %153 = vmatprep.subr.bf16.mxu0 0
    %154 = vmatpush1.bf16.msra.mxu0 0
    %155 = vmatprep.subr.bf16.mxu0 0
    %156 = vmatpush1.bf16.msra.mxu0 0
    %157 = vmatprep.subr.bf16.mxu0 0
    %158 = vmatpush1.bf16.msra.mxu0 0
    %159 = vmatprep.subr.bf16.mxu0 0
    %160 = vmatpush1.bf16.msra.mxu0 0
    %161 = vmatprep.subr.bf16.mxu0 0
    %162 = vmatpush1.bf16.msra.mxu0 0
    %163 = vmatprep.subr.bf16.mxu0 0
    %164 = vmatpush1.bf16.msra.mxu0 0
    %165 = vmatprep.mubr.bf16.mxu0 0
    %166 = vmatmul.mubr.bf16.gmra.mrb[0].mxu0 %v83
    %v167 = vpop.f32.mrb[0].mxu0
    %v168 = vadd.f32 0.0, %v167
    %v169 = vpop.f32.mrb[0].mxu0
    %v170 = vpop.f32.mrb[0].mxu0
    %v171 = vadd.f32 0.0, %v170
    %v172 = vpop.f32.mrb[0].mxu0
    %173 = vdwg.mxu0
    %v174 = vmax.f32 %v168, 0.0
    %v175 = vmax.f32 %v171, 0.0
    %v176 = vlaneseq
    %v177 = vshrl.u32 %v176, 7
    %v178 = vadd.s32 %v177, 8
    %v179 = vstv %s59
    %v180 = vadd.s32 %v177, %v179
    %v181 = vadd.s32 %v178, %v179
    %v182 = vlaneseq
    %v183 = vand.u32 %v182, 127
    %v184 = vmul.u32 %v180, 128
    %v185 = vmul.u32 %v181, 128
    %v186 = vadd.s32 %v184, %v183
    %v187 = vadd.s32 %v185, %v183
    %v188 = vstv %s60
    %v189 = vxor.u32 %v186, %v188
    %v190 = vxor.u32 %v187, %v188
    %v191 = vmul.u32 %v189, 2654435761
    %v192 = vmul.u32 %v190, 2654435761
    %v193 = vshrl.u32 %v191, 15
    %v194 = vshrl.u32 %v192, 15
    %v195 = vxor.u32 %v191, %v193
    %v196 = vxor.u32 %v192, %v194
    %v197 = vmul.u32 %v195, 2246822519
    %v198 = vmul.u32 %v196, 2246822519
    %v199 = vshrl.u32 %v197, 13
    %v200 = vshrl.u32 %v198, 13
    %v201 = vxor.u32 %v197, %v199
    %v202 = vxor.u32 %v198, %v200
    %v203 = vmul.u32 %v201, 3266489917
    %v204 = vmul.u32 %v202, 3266489917
    %v205 = vshrl.u32 %v203, 16
    %v206 = vshrl.u32 %v204, 16
    %v207 = vxor.u32 %v203, %v205
    %v208 = vxor.u32 %v204, %v206
    %vm209 = vcmp.lt.u32.totalorder %v207, 2147483648
    %vm210 = vcmp.lt.u32.totalorder %v208, 2147483648
    %v211 = vadd.f32 %v174, %v174
    %v212 = vadd.f32 %v175, %v175
    %v213 = vsel %vm209, %v211, 0.0
    %v214 = vsel %vm210, %v212, 0.0
    %v215 = vpack.c.bf16 %v214, %v213
    %v216 = vld [vmem:[#allocation9] sm:$0xf]
    %v217 = vld [vmem:[#allocation9 + $0x4] sm:$0xf]
    %v218 = vld [vmem:[#allocation9 + $0x8] sm:$0xf]
    %v219 = vld [vmem:[#allocation9 + $0xc] sm:$0xf]
    %v220 = vld [vmem:[#allocation9 + $0x10] sm:$0xf]
    %v221 = vld [vmem:[#allocation9 + $0x14] sm:$0xf]
    %v222 = vld [vmem:[#allocation9 + $0x18] sm:$0xf]
    %v223 = vld [vmem:[#allocation9 + $0x1c] sm:$0xf]
    %v224 = vld [vmem:[#allocation9 + $0x20] sm:$0xf]
    %v225 = vld [vmem:[#allocation9 + $0x24] sm:$0xf]
    %v226 = vld [vmem:[#allocation9 + $0x28] sm:$0xf]
    %v227 = vld [vmem:[#allocation9 + $0x2c] sm:$0xf]
    %v228 = vld [vmem:[#allocation9 + $0x30] sm:$0xf]
    %v229 = vld [vmem:[#allocation9 + $0x34] sm:$0xf]
    %v230 = vld [vmem:[#allocation9 + $0x38] sm:$0xf]
    %v231 = vld [vmem:[#allocation9 + $0x3c] sm:$0xf]
    %v248 = vunpack.c.l.b16 %v216
    %v249 = vunpack.c.l.b16 %v217
    %v250 = vunpack.c.l.b16 %v218
    %v251 = vunpack.c.l.b16 %v219
    %v252 = vunpack.c.l.b16 %v220
    %v253 = vunpack.c.l.b16 %v221
    %v254 = vunpack.c.l.b16 %v222
    %v255 = vunpack.c.l.b16 %v223
    %v256 = vunpack.c.l.b16 %v224
    %v257 = vunpack.c.l.b16 %v225
    %v258 = vunpack.c.l.b16 %v226
    %v259 = vunpack.c.l.b16 %v227
    %v260 = vunpack.c.l.b16 %v228
    %v261 = vunpack.c.l.b16 %v229
    %v262 = vunpack.c.l.b16 %v230
    %v263 = vunpack.c.l.b16 %v231
    %v264 = vpack.c.b16 %v249, %v248
    %v265 = vpack.c.b16 %v251, %v250
    %v266 = vpack.c.b16 %v253, %v252
    %v267 = vpack.c.b16 %v255, %v254
    %v268 = vpack.c.b16 %v257, %v256
    %v269 = vpack.c.b16 %v259, %v258
    %v270 = vpack.c.b16 %v261, %v260
    %v271 = vpack.c.b16 %v263, %v262
    %280 = vmatprep.subr.bf16.mxu0 0
    %281 = vmatpush1.bf16.msra.mxu0 %v264
    %282 = vmatprep.subr.bf16.mxu0 0
    %283 = vmatpush1.bf16.msra.mxu0 %v265
    %284 = vmatprep.subr.bf16.mxu0 0
    %285 = vmatpush1.bf16.msra.mxu0 %v266
    %286 = vmatprep.subr.bf16.mxu0 0
    %287 = vmatpush1.bf16.msra.mxu0 %v267
    %288 = vmatprep.subr.bf16.mxu0 0
    %289 = vmatpush1.bf16.msra.mxu0 %v268
    %290 = vmatprep.subr.bf16.mxu0 0
    %291 = vmatpush1.bf16.msra.mxu0 %v269
    %292 = vmatprep.subr.bf16.mxu0 0
    %293 = vmatpush1.bf16.msra.mxu0 %v270
    %294 = vmatprep.subr.bf16.mxu0 0
    %295 = vmatpush1.bf16.msra.mxu0 %v271
    %296 = vmatprep.subr.bf16.mxu0 0
    %297 = vmatpush1.bf16.msra.mxu0 0
    %298 = vmatprep.subr.bf16.mxu0 0
    %299 = vmatpush1.bf16.msra.mxu0 0
    %300 = vmatprep.subr.bf16.mxu0 0
    %301 = vmatpush1.bf16.msra.mxu0 0
    %302 = vmatprep.subr.bf16.mxu0 0
    %303 = vmatpush1.bf16.msra.mxu0 0
    %304 = vmatprep.subr.bf16.mxu0 0
    %305 = vmatpush1.bf16.msra.mxu0 0
    %306 = vmatprep.subr.bf16.mxu0 0
    %307 = vmatpush1.bf16.msra.mxu0 0
    %308 = vmatprep.subr.bf16.mxu0 0
    %309 = vmatpush1.bf16.msra.mxu0 0
    %310 = vmatprep.subr.bf16.mxu0 0
    %311 = vmatpush1.bf16.msra.mxu0 0
    %312 = vmatprep.mubr.bf16.mxu0 0
    %313 = vmatmul.mubr.bf16.gmra.mrb[0].mxu0 %v215
    %v314 = vpop.f32.mrb[0].mxu0
    %v315 = vadd.f32 0.0, %v314
    %v316 = vpop.f32.mrb[0].mxu0
    %v317 = vpop.f32.mrb[0].mxu0
    %v318 = vadd.f32 0.0, %v317
    %v319 = vpop.f32.mrb[0].mxu0
    %320 = vdwg.mxu0
    %v321 = vmax.f32 %v315, 0.0
    %v322 = vmax.f32 %v318, 0.0
    %v323 = vxor.u32 %v189, 2654435769
    %v324 = vxor.u32 %v190, 2654435769
    %v325 = vmul.u32 %v323, 2654435761
    %v326 = vmul.u32 %v324, 2654435761
    %v327 = vshrl.u32 %v325, 15
    %v328 = vshrl.u32 %v326, 15
    %v329 = vxor.u32 %v325, %v327
    %v330 = vxor.u32 %v326, %v328
    %v331 = vmul.u32 %v329, 2246822519
    %v332 = vmul.u32 %v330, 2246822519
    %v333 = vshrl.u32 %v331, 13
    %v334 = vshrl.u32 %v332, 13
    %v335 = vxor.u32 %v331, %v333
    %v336 = vxor.u32 %v332, %v334
    %v337 = vmul.u32 %v335, 3266489917
    %v338 = vmul.u32 %v336, 3266489917
    %v339 = vshrl.u32 %v337, 16
    %v340 = vshrl.u32 %v338, 16
    %v341 = vxor.u32 %v337, %v339
    %v342 = vxor.u32 %v338, %v340
    %vm343 = vcmp.lt.u32.totalorder %v341, 2147483648
    %vm344 = vcmp.lt.u32.totalorder %v342, 2147483648
    %v345 = vadd.f32 %v321, %v321
    %v346 = vadd.f32 %v322, %v322
    %v347 = vsel %vm343, %v345, 0.0
    %v348 = vsel %vm344, %v346, 0.0
    %349 = vst [vmem:[#allocation10] sm:$0xff] %v347
    %350 = vst [vmem:[#allocation10 + $0x8] sm:$0xff] %v348
    // Predicated region
    $region26: #{tpu_custom_call.1} parent=1 // pred_check
      _
    $region27: #{tpu_custom_call.1} parent=1 // pred_check_branch
      %352 = sbr.rel (0) target = $region29
    $region28: #{tpu_custom_call.1} parent=1 // pred_region
      %s354 = ssub.s32 256, 256
      %355 = vsyncadd [#allocation6], %s354
      %s356 = sshll.u32 [#allocation10], 4
      %s357 = int_to_ptr.vmem [resolvable:$true] %s356
      %362 = dma.vmem_to_hbm [thread:$0]  %s357, 256, %s4, [#allocation6], 128, 128, 8
    $region29: #{tpu_custom_call.1} parent=1 // pred_fallthru
      _
    // Predicated region
    $region30: #{tpu_custom_call.1} parent=1 // pred_check
      _
    $region31: #{tpu_custom_call.1} parent=1 // pred_check_branch
      %364 = sbr.rel (0) target = $region33
    $region32: #{tpu_custom_call.1} parent=1 // pred_region
      %365 = dma.done [#allocation6], 256
    $region33: #{tpu_custom_call.1} parent=1 // pred_fallthru
      _
    %366 = vsyncpa [#allocation5], 1
    %367 = vsyncpa [#allocation8], 1
    %368 = vsyncpa [#allocation6], 1

</llo_original>
